<compile_context>
chip_gen: v7x
topology: tpu7x:2x2x1
jax: 0.10.0
libtpu: 0.0.40
codegen_flags: <defaults>
</compile_context>

<pallas_src>
import functools

import jax
import jax.numpy as jnp
from jax import lax
from jax.experimental import pallas as pl
from jax.experimental.pallas import tpu as pltpu


def _round_up(x, m):
    return ((x + m - 1) // m) * m


def _choose_tm(batch):
    """Batch-tile (lane) width: as few grid steps as possible."""
    bp = _round_up(batch, 128)
    if bp <= 8192:
        return bp                       # whole batch in a single grid step
    # Huge batch: a few fat steps; keep the step count even so v7x's two
    # TensorCores get balanced work under dimension_semantics=("parallel",).
    n_blocks = _round_up(pl.cdiv(bp, 8192), 2)
    return _round_up(pl.cdiv(bp, n_blocks), 128)


def _choose_lane_chunk(tm, preferred=512):
    """Largest multiple of 128 that divides tm and is <= preferred."""
    lc = min(preferred, tm)
    while tm % lc:
        lc -= 128
    return lc


def mlp_kernel(xT_ref, w1T_ref, b1T_ref, w2_ref, b2_ref, oT_ref, *, lane_chunk):
    """Feature-major tiles (batch on the 128-lane axis):
       xT:  (in_dim, tm)    w1T: (H, in_dim)   b1T: (H, 1)
       w2:  (H, 1)          b2:  (1, 1) in SMEM (scalar)
       oT:  (1, tm)         lane-dense output slab
    """
    in_dim, tm = xT_ref.shape

    # Grid-invariant operands: tiny, loaded once per grid step (hoisted out of the
    # chunk loop so JAX does not re-emit the broadcasts per iteration).
    w1T = w1T_ref[...]                      # (H, in_dim)
    b1T = b1T_ref[...]                      # (H, 1) broadcasts over lanes
    w2 = w2_ref[...]                        # (H, 1)
    b2 = b2_ref[0, 0]                       # scalar from SMEM

    n_chunks = tm // lane_chunk

    def chunk_body(c, carry):
        start = pl.multiple_of(c * lane_chunk, 128)
        x_c = xT_ref[:, pl.ds(start, lane_chunk)]              # (in_dim, LC)

        # Layer 1: hidden = relu(W1^T x + b1) as unrolled VPU FMAs (K = in_dim = 2;
        # an MXU pass would pad the contraction to 128/256 and waste >98%).
        h = b1T + w1T[:, 0:1] * x_c[0:1, :]                    # (H, LC)
        for k in range(1, in_dim):                              # static unroll
            h = h + w1T[:, k:k + 1] * x_c[k:k + 1, :]
        h = jnp.maximum(h, 0.0)                                  # ReLU on the VPU

        # Layer 2: out = w2 . hidden + b2 as VPU multiply + cross-sublane reduce.
        o = jnp.sum(h * w2, axis=0, keepdims=True) + b2          # (1, LC)
        oT_ref[:, pl.ds(start, lane_chunk)] = o.astype(oT_ref.dtype)
        return carry

    # Chunked over lanes so the (H, LC) intermediate stays in vregs even for big tm.
    lax.fori_loop(0, n_chunks, chunk_body, 0, unroll=True)
    # TODO(synk): n_layers > 2 (hidden->hidden blocks), out_dim > 1, or an
    # output_activation would reinstate real MXU matmuls; the module defaults
    # (2 -> 64 -> 1, ReLU, no output activation) do not need them.


def simple_mlp_pallas(x, w1, b1, w2, b2, *, tm=None, lane_chunk=512):
    """x: (B, in_dim); w1: (in_dim, H); b1: (1, H); w2: (H, 1); b2: (1, 1) -> (B, 1)."""
    batch, in_dim = x.shape
    hidden = w1.shape[1]
    out_dim = w2.shape[1]
    assert out_dim == 1, "kernel is specialized to the module default out_dim=1"

    if tm is None:
        tm = _choose_tm(batch)
    tm = max(128, _round_up(tm, 128))
    lc = _choose_lane_chunk(tm, lane_chunk)
    n_blocks = pl.cdiv(batch, tm)

    # Layout plumbing: batch onto the lane axis. No padding — the ragged last block
    # is handled by Pallas' masked edge-block reads/writes.
    xT = x.T                                      # (in_dim, B)
    w1T = w1.T                                    # (H, in_dim)
    b1T = jnp.reshape(b1, (hidden, 1))            # (H, 1)
    b2r = jnp.reshape(b2, (1, 1))                 # (1, 1) -> SMEM scalar

    kernel = functools.partial(mlp_kernel, lane_chunk=lc)

    flops = int(batch) * (2 * in_dim * hidden + hidden + 2 * hidden + out_dim)
    bytes_accessed = 4 * (int(batch) * (in_dim + out_dim)
                          + in_dim * hidden + 2 * hidden + 1)

    oT = pl.pallas_call(
        kernel,
        out_shape=jax.ShapeDtypeStruct((1, batch), x.dtype),
        grid_spec=pltpu.PrefetchScalarGridSpec(
            num_scalar_prefetch=0,
            grid=(n_blocks,),
            in_specs=[
                pl.BlockSpec((in_dim, tm), lambda i: (0, i)),        # batch-tiled input
                pl.BlockSpec((hidden, in_dim), lambda i: (0, 0)),    # resident weights
                pl.BlockSpec((hidden, 1), lambda i: (0, 0)),
                pl.BlockSpec((hidden, 1), lambda i: (0, 0)),
                pl.BlockSpec(memory_space=pltpu.MemorySpace.SMEM),   # b2 scalar
            ],
            out_specs=pl.BlockSpec((1, tm), lambda i: (0, i)),       # lane-dense output
        ),
        compiler_params=pltpu.CompilerParams(
            dimension_semantics=("parallel",),   # megacore / v7x dual-TC sharding
        ),
        cost_estimate=pl.CostEstimate(
            flops=flops, transcendentals=0, bytes_accessed=bytes_accessed),
    )(xT, w1T, b1T, w2, b2r)

    return jnp.reshape(oT, (batch, out_dim))      # (1, B) -> (B, 1), metadata only


def init_linear(key, in_dim, out_dim, dtype=jnp.float32):
    """Deterministic init mimicking torch.nn.Linear defaults:
       W, b ~ U(-1/sqrt(in_dim), 1/sqrt(in_dim)). Returned W is (in_dim, out_dim)."""
    kw, kb = jax.random.split(key)
    bound = 1.0 / (in_dim ** 0.5)
    w = jax.random.uniform(kw, (in_dim, out_dim), dtype, minval=-bound, maxval=bound)
    b = jax.random.uniform(kb, (1, out_dim), dtype, minval=-bound, maxval=bound)
    return w, b


def reference_mlp(x, w1, b1, w2, b2):
    # Force true-f32 matmuls for the reference (TPU default matmul precision is bf16,
    # which would not match the exact-f32 VPU path in the kernel at 1e-5).
    hp = lax.Precision.HIGHEST
    h = jnp.maximum(jnp.dot(x, w1, precision=hp) + b1, 0.0)
    return jnp.dot(h, w2, precision=hp) + b2


if __name__ == "__main__":
    # Module defaults: in_dim=2, out_dim=1, hidden_dim=64, n_layers=2, ReLU, no output act.
    in_dim, out_dim, hidden_dim = 2, 1, 64
    batch = 300   # not a multiple of 128 -> exercises the ragged (masked) edge block

    key = jax.random.PRNGKey(0)
    kx, kx2, k1, k2 = jax.random.split(key, 4)

    x = jax.random.normal(kx, (batch, in_dim), dtype=jnp.float32)
    w1, b1 = init_linear(k1, in_dim, hidden_dim)
    w2, b2 = init_linear(k2, hidden_dim, out_dim)

    # Auto tiling -> single 384-lane block, grid=(1,) (per-step overhead amortized).
    out = simple_mlp_pallas(x, w1, b1, w2, b2)
    out = jax.block_until_ready(out)

    ref = reference_mlp(x, w1, b1, w2, b2)
    assert out.shape == (batch, out_dim)
    assert jnp.allclose(out, ref, atol=1e-5, rtol=1e-5), "Pallas output mismatch vs reference"

    # Also exercise the multi-block grid + multi-chunk inner loop + ragged last block.
    batch2 = 1200
    x2 = jax.random.normal(kx2, (batch2, in_dim), dtype=jnp.float32)
    out2 = jax.block_until_ready(simple_mlp_pallas(x2, w1, b1, w2, b2, tm=1024))
    ref2 = reference_mlp(x2, w1, b1, w2, b2)
    assert jnp.allclose(out2, ref2, atol=1e-5, rtol=1e-5), "Pallas output mismatch (multi-block)"

    print("KERNEL_OK")
</pallas_src>

<mosaic_0001>
module attributes {stable_mosaic.version = 11 : i64} {
  func.func @mlp_kernel(%arg0: i32, %arg1: memref<2x384xf32, #tpu.memory_space<vmem>>, %arg2: memref<64x2xf32, #tpu.memory_space<vmem>>, %arg3: memref<64x1xf32, #tpu.memory_space<vmem>>, %arg4: memref<64x1xf32, #tpu.memory_space<vmem>>, %arg5: memref<1x1xf32, #tpu.memory_space<smem>>, %arg6: memref<1x384xf32, #tpu.memory_space<vmem>>) attributes {dimension_semantics = [#tpu.dimension_semantics<parallel>], iteration_bounds = array<i64: 1>, scalar_prefetch = 0 : i64, scratch_operands = 0 : i64, tpu.core_type = #tpu.core_type<tc>, window_params = [{transform_indices = @transform_0, window_bounds = array<i64: 2, 384>}, {pipeline_mode = #tpu.pipeline_mode<synchronous>, transform_indices = @transform_1, window_bounds = array<i64: 64, 2>}, {pipeline_mode = #tpu.pipeline_mode<synchronous>, transform_indices = @transform_2, window_bounds = array<i64: 64, 1>}, {pipeline_mode = #tpu.pipeline_mode<synchronous>, transform_indices = @transform_3, window_bounds = array<i64: 64, 1>}, {transform_indices = @transform_4, window_bounds = array<i64: 1, 1>}, {transform_indices = @transform_5, window_bounds = array<i64: 1, 384>}]} {
    %c0 = arith.constant 0 : index
    %c0_0 = arith.constant 0 : index
    %0 = vector.load %arg2[%c0, %c0_0] : memref<64x2xf32, #tpu.memory_space<vmem>>, vector<64x2xf32>
    %c0_1 = arith.constant 0 : index
    %c0_2 = arith.constant 0 : index
    %1 = vector.load %arg3[%c0_1, %c0_2] : memref<64x1xf32, #tpu.memory_space<vmem>>, vector<64x1xf32>
    %c0_3 = arith.constant 0 : index
    %c0_4 = arith.constant 0 : index
    %2 = vector.load %arg4[%c0_3, %c0_4] : memref<64x1xf32, #tpu.memory_space<vmem>>, vector<64x1xf32>
    %c0_5 = arith.constant 0 : index
    %c0_6 = arith.constant 0 : index
    %3 = memref.load %arg5[%c0_5, %c0_6] : memref<1x1xf32, #tpu.memory_space<smem>>
    %c0_i32 = arith.constant 0 : i32
    %c384_i32 = arith.constant 384 : i32
    %4 = arith.muli %c0_i32, %c384_i32 : i32
    %5 = tpu.assume_multiple %4, 128 : i32
    %c0_7 = arith.constant 0 : index
    %6 = arith.index_cast %5 : i32 to index
    %7 = vector.load %arg1[%c0_7, %6] : memref<2x384xf32, #tpu.memory_space<vmem>>, vector<2x384xf32>
    %8 = vector.extract_strided_slice %0 {offsets = [0, 0], sizes = [64, 1], strides = [1, 1]} : vector<64x2xf32> to vector<64x1xf32>
    %9 = vector.extract_strided_slice %7 {offsets = [0, 0], sizes = [1, 384], strides = [1, 1]} : vector<2x384xf32> to vector<1x384xf32>
    %10 = vector.broadcast %8 : vector<64x1xf32> to vector<64x384xf32>
    %11 = vector.broadcast %9 : vector<1x384xf32> to vector<64x384xf32>
    %12 = arith.mulf %10, %11 : vector<64x384xf32>
    %13 = vector.broadcast %1 : vector<64x1xf32> to vector<64x384xf32>
    %14 = arith.addf %13, %12 : vector<64x384xf32>
    %15 = vector.extract_strided_slice %0 {offsets = [0, 1], sizes = [64, 1], strides = [1, 1]} : vector<64x2xf32> to vector<64x1xf32>
    %16 = vector.extract_strided_slice %7 {offsets = [1, 0], sizes = [1, 384], strides = [1, 1]} : vector<2x384xf32> to vector<1x384xf32>
    %17 = vector.broadcast %15 : vector<64x1xf32> to vector<64x384xf32>
    %18 = vector.broadcast %16 : vector<1x384xf32> to vector<64x384xf32>
    %19 = arith.mulf %17, %18 : vector<64x384xf32>
    %20 = arith.addf %14, %19 : vector<64x384xf32>
    %cst = arith.constant 0.000000e+00 : f32
    %21 = vector.broadcast %cst : f32 to vector<64x384xf32>
    %22 = arith.maximumf %20, %21 : vector<64x384xf32>
    %23 = vector.broadcast %2 : vector<64x1xf32> to vector<64x384xf32>
    %24 = arith.mulf %22, %23 : vector<64x384xf32>
    %cst_8 = arith.constant dense<0.000000e+00> : vector<384xf32>
    %25 = vector.multi_reduction <add>, %24, %cst_8 [0] : vector<64x384xf32> to vector<384xf32>
    %26 = vector.shape_cast %25 : vector<384xf32> to vector<1x384xf32>
    %27 = vector.broadcast %3 : f32 to vector<1x384xf32>
    %28 = arith.addf %26, %27 : vector<1x384xf32>
    %c0_9 = arith.constant 0 : index
    %29 = arith.index_cast %5 : i32 to index
    %30 = vector.load %arg6[%c0_9, %29] : memref<1x384xf32, #tpu.memory_space<vmem>>, vector<1x384xf32>
    tpu.vector_store %arg6[%c0_9, %29], %28 {strides = array<i32>} : memref<1x384xf32, #tpu.memory_space<vmem>>, vector<1x384xf32>,
    %c1_i32 = arith.constant 1 : i32
    return
  }
  func.func @transform_0(%arg0: i32) -> (i32, i32) {
    %c0_i32 = arith.constant 0 : i32
    %c0_i32_0 = arith.constant 0 : i32
    return %c0_i32, %arg0 : i32, i32
  }
  func.func @transform_1(%arg0: i32) -> (i32, i32) {
    %c0_i32 = arith.constant 0 : i32
    %c0_i32_0 = arith.constant 0 : i32
    %c0_i32_1 = arith.constant 0 : i32
    return %c0_i32, %c0_i32_0 : i32, i32
  }
  func.func @transform_2(%arg0: i32) -> (i32, i32) {
    %c0_i32 = arith.constant 0 : i32
    %c0_i32_0 = arith.constant 0 : i32
    %c0_i32_1 = arith.constant 0 : i32
    return %c0_i32, %c0_i32_0 : i32, i32
  }
  func.func @transform_3(%arg0: i32) -> (i32, i32) {
    %c0_i32 = arith.constant 0 : i32
    %c0_i32_0 = arith.constant 0 : i32
    %c0_i32_1 = arith.constant 0 : i32
    return %c0_i32, %c0_i32_0 : i32, i32
  }
  func.func @transform_4(%arg0: i32) -> (i32, i32) {
    %c0_i32 = arith.constant 0 : i32
    %c0_i32_0 = arith.constant 0 : i32
    %c0_i32_1 = arith.constant 0 : i32
    return %c0_i32, %c0_i32_0 : i32, i32
  }
  func.func @transform_5(%arg0: i32) -> (i32, i32) {
    %c0_i32 = arith.constant 0 : i32
    %c0_i32_0 = arith.constant 0 : i32
    return %c0_i32, %arg0 : i32, i32
  }
}

</mosaic_0001>

<llo_original>
// kernel: tpu_custom_call.1
$region0: #{tpu_custom_call.1}
  #allocation0 [shape = 'u32[]', space=smem, size = 0x4, offset = 0x4, fixed_abs, tag = 'smem constant byte address 0x4 - core index']
  #allocation1 [shape = 'u32[144,128]{1,0:T(1,128)}', space=vmem, size = 0x12000, scoped, tag = 'internal scratch']
  #allocation2 [shape = 'f32[1,1]{1,0:T(1,128)S(6)}', space=smem, size = 0x200, scoped, tag = 'scoped memory for tpu_custom_call.1']
  %s0 = inlined_call_operand.vmem [shape: f32[2,300], index: 0, kind: input, shape index: {}]
  %s1 = inlined_call_operand.vmem [shape: f32[64,2], index: 1, kind: input, shape index: {}]
  %s2 = inlined_call_operand.vmem [shape: f32[64,1], index: 2, kind: input, shape index: {}]
  %s3 = inlined_call_operand.vmem [shape: f32[64,1], index: 3, kind: input, shape index: {}]
  %s4 = inlined_call_operand.<no memory space> [shape: f32[1,1], index: 4, kind: input, shape index: {}]
  %s5 = inlined_call_operand.hbm [shape: f32[1,300], index: 5, kind: output, shape index: {}]
  %s6 = sld [smem:[#allocation0]]
  $region30: #{tpu_custom_call.1} parent=0
    _
  %s8 = ssub.s32 1, %s6
  %s9 = scalar_select 0, %s8, %s6
  %10 = sst [smem:[#allocation2]] %s4
  $region1: #{tpu_custom_call.1} parent=0
    #allocation3 [shape = 'u8[1536]{0}', space=vmem, size = 0x800, scoped, tag = 'output window, operand 0, single buffered']
    #allocation4 [shape = 's32[1]{0}', space=sflag, size = 0x4, scoped, tag = 'scoped memory for tpu_custom_call.1']
    %11 = vsyncpa [#allocation4], 0
    // Predicated region
    $region2: #{tpu_custom_call.1} parent=1 // pred_check
      _
    $region3: #{tpu_custom_call.1} parent=1 // pred_check_branch
      %13 = sbr.rel (0) target = $region5
    $region4: #{tpu_custom_call.1} parent=1 // pred_region
      _
    $region5: #{tpu_custom_call.1} parent=1 // pred_fallthru
      _
    // Predicated region
    $region6: #{tpu_custom_call.1} parent=1 // pred_check
      _
    $region7: #{tpu_custom_call.1} parent=1 // pred_check_branch
      %15 = sbr.rel (0) target = $region9
    $region8: #{tpu_custom_call.1} parent=1 // pred_region
      _
    $region9: #{tpu_custom_call.1} parent=1 // pred_fallthru
      _
    // Predicated region
    $region10: #{tpu_custom_call.1} parent=1 // pred_check
      _
    $region11: #{tpu_custom_call.1} parent=1 // pred_check_branch
      %17 = sbr.rel (0) target = $region13
    $region12: #{tpu_custom_call.1} parent=1 // pred_region
      _
    $region13: #{tpu_custom_call.1} parent=1 // pred_fallthru
      _
    // Predicated region
    $region14: #{tpu_custom_call.1} parent=1 // pred_check
      _
    $region15: #{tpu_custom_call.1} parent=1 // pred_check_branch
      %19 = sbr.rel (0) target = $region17
    $region16: #{tpu_custom_call.1} parent=1 // pred_region
      _
    $region17: #{tpu_custom_call.1} parent=1 // pred_fallthru
      _
    // Predicated region
    $region18: #{tpu_custom_call.1} parent=1 // pred_check
      _
    $region19: #{tpu_custom_call.1} parent=1 // pred_check_branch
      %21 = sbr.rel (0) target = $region21
    $region20: #{tpu_custom_call.1} parent=1 // pred_region
      _
    $region21: #{tpu_custom_call.1} parent=1 // pred_fallthru
      _
    %v22 = vld [vmem:[%s1] sm:$0xff]
    %v23 = vld [vmem:[%s1 + $0x8] sm:$0xff]
    %v24 = vld [vmem:[%s1 + $0x10] sm:$0xff]
    %v25 = vld [vmem:[%s1 + $0x18] sm:$0xff]
    %v26 = vld [vmem:[%s1 + $0x20] sm:$0xff]
    %v27 = vld [vmem:[%s1 + $0x28] sm:$0xff]
    %v28 = vld [vmem:[%s1 + $0x30] sm:$0xff]
    %v29 = vld [vmem:[%s1 + $0x38] sm:$0xff]
    %v30 = vld [vmem:[%s2] sm:$0xff]
    %v31 = vld [vmem:[%s2 + $0x8] sm:$0xff]
    %v32 = vld [vmem:[%s2 + $0x10] sm:$0xff]
    %v33 = vld [vmem:[%s2 + $0x18] sm:$0xff]
    %v34 = vld [vmem:[%s2 + $0x20] sm:$0xff]
    %v35 = vld [vmem:[%s2 + $0x28] sm:$0xff]
    %v36 = vld [vmem:[%s2 + $0x30] sm:$0xff]
    %v37 = vld [vmem:[%s2 + $0x38] sm:$0xff]
    %v38 = vld [vmem:[%s3] sm:$0xff]
    %v39 = vld [vmem:[%s3 + $0x8] sm:$0xff]
    %v40 = vld [vmem:[%s3 + $0x10] sm:$0xff]
    %v41 = vld [vmem:[%s3 + $0x18] sm:$0xff]
    %v42 = vld [vmem:[%s3 + $0x20] sm:$0xff]
    %v43 = vld [vmem:[%s3 + $0x28] sm:$0xff]
    %v44 = vld [vmem:[%s3 + $0x30] sm:$0xff]
    %v45 = vld [vmem:[%s3 + $0x38] sm:$0xff]
    %s46 = sld [smem:[#allocation2]]
    %v47 = vld [vmem:[%s0] sm:$0x3f]
    %49 = vset.pattern.permute.xlu0 0
    %50 = vperm.xlu0 %49, %v22
    %v51 = vpop.permute.xlu0 %50
    %54 = vset.pattern.permute.xlu0 0
    %55 = vperm.xlu0 %54, %v23
    %v56 = vpop.permute.xlu0 %55
    %59 = vset.pattern.permute.xlu0 0
    %60 = vperm.xlu0 %59, %v24
    %v61 = vpop.permute.xlu0 %60
    %64 = vset.pattern.permute.xlu0 0
    %65 = vperm.xlu0 %64, %v25
    %v66 = vpop.permute.xlu0 %65
    %69 = vset.pattern.permute.xlu0 0
    %70 = vperm.xlu0 %69, %v26
    %v71 = vpop.permute.xlu0 %70
    %74 = vset.pattern.permute.xlu0 0
    %75 = vperm.xlu0 %74, %v27
    %v76 = vpop.permute.xlu0 %75
    %79 = vset.pattern.permute.xlu0 0
    %80 = vperm.xlu0 %79, %v28
    %v81 = vpop.permute.xlu0 %80
    %84 = vset.pattern.permute.xlu0 0
    %85 = vperm.xlu0 %84, %v29
    %v86 = vpop.permute.xlu0 %85
    %v89 = vlaneseq
    %v90 = vshrl.u32 %v89, 7
    %v91 = vsub.s32 0, %v90
    %v92 = vrot.slane %v47, %v91
    %v93 = vlaneseq
    %v94 = vshrl.u32 %v93, 7
    %v95 = vsub.s32 2, %v94
    %v96 = vrot.slane %v47, %v95
    %v97 = vlaneseq
    %v98 = vshrl.u32 %v97, 7
    %v99 = vsub.s32 4, %v98
    %v100 = vrot.slane %v47, %v99
    %v104 = vlaneseq
    %v105 = vshrl.u32 %v104, 7
    %v106 = vsub.s32 0, %v105
    %v107 = vrot.slane %v92, %v106
    %v108 = vlaneseq
    %v109 = vshrl.u32 %v108, 7
    %v110 = vsub.s32 0, %v109
    %v111 = vrot.slane %v96, %v110
    %v112 = vlaneseq
    %v113 = vshrl.u32 %v112, 7
    %v114 = vsub.s32 0, %v113
    %v115 = vrot.slane %v100, %v114
    %v116 = vmul.f32 %v51, %v107
    %v117 = vmul.f32 %v51, %v111
    %v118 = vmul.f32 %v51, %v115
    %v119 = vmul.f32 %v56, %v107
    %v120 = vmul.f32 %v56, %v111
    %v121 = vmul.f32 %v56, %v115
    %v122 = vmul.f32 %v61, %v107
    %v123 = vmul.f32 %v61, %v111
    %v124 = vmul.f32 %v61, %v115
    %v125 = vmul.f32 %v66, %v107
    %v126 = vmul.f32 %v66, %v111
    %v127 = vmul.f32 %v66, %v115
    %v128 = vmul.f32 %v71, %v107
    %v129 = vmul.f32 %v71, %v111
    %v130 = vmul.f32 %v71, %v115
    %v131 = vmul.f32 %v76, %v107
    %v132 = vmul.f32 %v76, %v111
    %v133 = vmul.f32 %v76, %v115
    %v134 = vmul.f32 %v81, %v107
    %v135 = vmul.f32 %v81, %v111
    %v136 = vmul.f32 %v81, %v115
    %v137 = vmul.f32 %v86, %v107
    %v138 = vmul.f32 %v86, %v111
    %v139 = vmul.f32 %v86, %v115
    %141 = vset.pattern.permute.xlu0 0
    %142 = vperm.xlu0 %141, %v30
    %v143 = vpop.permute.xlu0 %142
    %146 = vset.pattern.permute.xlu0 0
    %147 = vperm.xlu0 %146, %v31
    %v148 = vpop.permute.xlu0 %147
    %151 = vset.pattern.permute.xlu0 0
    %152 = vperm.xlu0 %151, %v32
    %v153 = vpop.permute.xlu0 %152
    %156 = vset.pattern.permute.xlu0 0
    %157 = vperm.xlu0 %156, %v33
    %v158 = vpop.permute.xlu0 %157
    %161 = vset.pattern.permute.xlu0 0
    %162 = vperm.xlu0 %161, %v34
    %v163 = vpop.permute.xlu0 %162
    %166 = vset.pattern.permute.xlu0 0
    %167 = vperm.xlu0 %166, %v35
    %v168 = vpop.permute.xlu0 %167
    %171 = vset.pattern.permute.xlu0 0
    %172 = vperm.xlu0 %171, %v36
    %v173 = vpop.permute.xlu0 %172
    %176 = vset.pattern.permute.xlu0 0
    %177 = vperm.xlu0 %176, %v37
    %v178 = vpop.permute.xlu0 %177
    %v180 = vadd.f32 %v143, %v116
    %v181 = vadd.f32 %v143, %v117
    %v182 = vadd.f32 %v143, %v118
    %v183 = vadd.f32 %v148, %v119
    %v184 = vadd.f32 %v148, %v120
    %v185 = vadd.f32 %v148, %v121
    %v186 = vadd.f32 %v153, %v122
    %v187 = vadd.f32 %v153, %v123
    %v188 = vadd.f32 %v153, %v124
    %v189 = vadd.f32 %v158, %v125
    %v190 = vadd.f32 %v158, %v126
    %v191 = vadd.f32 %v158, %v127
    %v192 = vadd.f32 %v163, %v128
    %v193 = vadd.f32 %v163, %v129
    %v194 = vadd.f32 %v163, %v130
    %v195 = vadd.f32 %v168, %v131
    %v196 = vadd.f32 %v168, %v132
    %v197 = vadd.f32 %v168, %v133
    %v198 = vadd.f32 %v173, %v134
    %v199 = vadd.f32 %v173, %v135
    %v200 = vadd.f32 %v173, %v136
    %v201 = vadd.f32 %v178, %v137
    %v202 = vadd.f32 %v178, %v138
    %v203 = vadd.f32 %v178, %v139
    %204 = vset.pattern.permute.xlu0 1
    %205 = vperm.xlu0 %204, %v22
    %v206 = vpop.permute.xlu0 %205
    %208 = vset.pattern.permute.xlu0 1
    %209 = vperm.xlu0 %208, %v23
    %v210 = vpop.permute.xlu0 %209
    %212 = vset.pattern.permute.xlu0 1
    %213 = vperm.xlu0 %212, %v24
    %v214 = vpop.permute.xlu0 %213
    %216 = vset.pattern.permute.xlu0 1
    %217 = vperm.xlu0 %216, %v25
    %v218 = vpop.permute.xlu0 %217
    %220 = vset.pattern.permute.xlu0 1
    %221 = vperm.xlu0 %220, %v26
    %v222 = vpop.permute.xlu0 %221
    %224 = vset.pattern.permute.xlu0 1
    %225 = vperm.xlu0 %224, %v27
    %v226 = vpop.permute.xlu0 %225
    %228 = vset.pattern.permute.xlu0 1
    %229 = vperm.xlu0 %228, %v28
    %v230 = vpop.permute.xlu0 %229
    %232 = vset.pattern.permute.xlu0 1
    %233 = vperm.xlu0 %232, %v29
    %v234 = vpop.permute.xlu0 %233
    %v236 = vlaneseq
    %v237 = vshrl.u32 %v236, 7
    %v238 = vsub.s32 1, %v237
    %v239 = vrot.slane %v47, %v238
    %v240 = vlaneseq
    %v241 = vshrl.u32 %v240, 7
    %v242 = vsub.s32 3, %v241
    %v243 = vrot.slane %v47, %v242
    %v244 = vlaneseq
    %v245 = vshrl.u32 %v244, 7
    %v246 = vsub.s32 5, %v245
    %v247 = vrot.slane %v47, %v246
    %v251 = vlaneseq
    %v252 = vshrl.u32 %v251, 7
    %v253 = vsub.s32 1, %v252
    %v254 = vrot.slane %v239, %v253
    %v255 = vlaneseq
    %v256 = vshrl.u32 %v255, 7
    %v257 = vsub.s32 1, %v256
    %v258 = vrot.slane %v243, %v257
    %v259 = vlaneseq
    %v260 = vshrl.u32 %v259, 7
    %v261 = vsub.s32 1, %v260
    %v262 = vrot.slane %v247, %v261
    %v263 = vmul.f32 %v206, %v254
    %v264 = vmul.f32 %v206, %v258
    %v265 = vmul.f32 %v206, %v262
    %v266 = vmul.f32 %v210, %v254
    %v267 = vmul.f32 %v210, %v258
    %v268 = vmul.f32 %v210, %v262
    %v269 = vmul.f32 %v214, %v254
    %v270 = vmul.f32 %v214, %v258
    %v271 = vmul.f32 %v214, %v262
    %v272 = vmul.f32 %v218, %v254
    %v273 = vmul.f32 %v218, %v258
    %v274 = vmul.f32 %v218, %v262
    %v275 = vmul.f32 %v222, %v254
    %v276 = vmul.f32 %v222, %v258
    %v277 = vmul.f32 %v222, %v262
    %v278 = vmul.f32 %v226, %v254
    %v279 = vmul.f32 %v226, %v258
    %v280 = vmul.f32 %v226, %v262
    %v281 = vmul.f32 %v230, %v254
    %v282 = vmul.f32 %v230, %v258
    %v283 = vmul.f32 %v230, %v262
    %v284 = vmul.f32 %v234, %v254
    %v285 = vmul.f32 %v234, %v258
    %v286 = vmul.f32 %v234, %v262
    %v287 = vadd.f32 %v180, %v263
    %v288 = vadd.f32 %v181, %v264
    %v289 = vadd.f32 %v182, %v265
    %v290 = vadd.f32 %v183, %v266
    %v291 = vadd.f32 %v184, %v267
    %v292 = vadd.f32 %v185, %v268
    %v293 = vadd.f32 %v186, %v269
    %v294 = vadd.f32 %v187, %v270
    %v295 = vadd.f32 %v188, %v271
    %v296 = vadd.f32 %v189, %v272
    %v297 = vadd.f32 %v190, %v273
    %v298 = vadd.f32 %v191, %v274
    %v299 = vadd.f32 %v192, %v275
    %v300 = vadd.f32 %v193, %v276
    %v301 = vadd.f32 %v194, %v277
    %v302 = vadd.f32 %v195, %v278
    %v303 = vadd.f32 %v196, %v279
    %v304 = vadd.f32 %v197, %v280
    %v305 = vadd.f32 %v198, %v281
    %v306 = vadd.f32 %v199, %v282
    %v307 = vadd.f32 %v200, %v283
    %v308 = vadd.f32 %v201, %v284
    %v309 = vadd.f32 %v202, %v285
    %v310 = vadd.f32 %v203, %v286
    %v311 = vmax.f32 %v287, 0.0
    %v312 = vmax.f32 %v288, 0.0
    %v313 = vmax.f32 %v289, 0.0
    %v314 = vmax.f32 %v290, 0.0
    %v315 = vmax.f32 %v291, 0.0
    %v316 = vmax.f32 %v292, 0.0
    %v317 = vmax.f32 %v293, 0.0
    %v318 = vmax.f32 %v294, 0.0
    %v319 = vmax.f32 %v295, 0.0
    %v320 = vmax.f32 %v296, 0.0
    %v321 = vmax.f32 %v297, 0.0
    %v322 = vmax.f32 %v298, 0.0
    %v323 = vmax.f32 %v299, 0.0
    %v324 = vmax.f32 %v300, 0.0
    %v325 = vmax.f32 %v301, 0.0
    %v326 = vmax.f32 %v302, 0.0
    %v327 = vmax.f32 %v303, 0.0
    %v328 = vmax.f32 %v304, 0.0
    %v329 = vmax.f32 %v305, 0.0
    %v330 = vmax.f32 %v306, 0.0
    %v331 = vmax.f32 %v307, 0.0
    %v332 = vmax.f32 %v308, 0.0
    %v333 = vmax.f32 %v309, 0.0
    %v334 = vmax.f32 %v310, 0.0
    %336 = vset.pattern.permute.xlu0 0
    %337 = vperm.xlu0 %336, %v38
    %v338 = vpop.permute.xlu0 %337
    %341 = vset.pattern.permute.xlu0 0
    %342 = vperm.xlu0 %341, %v39
    %v343 = vpop.permute.xlu0 %342
    %346 = vset.pattern.permute.xlu0 0
    %347 = vperm.xlu0 %346, %v40
    %v348 = vpop.permute.xlu0 %347
    %351 = vset.pattern.permute.xlu0 0
    %352 = vperm.xlu0 %351, %v41
    %v353 = vpop.permute.xlu0 %352
    %356 = vset.pattern.permute.xlu0 0
    %357 = vperm.xlu0 %356, %v42
    %v358 = vpop.permute.xlu0 %357
    %361 = vset.pattern.permute.xlu0 0
    %362 = vperm.xlu0 %361, %v43
    %v363 = vpop.permute.xlu0 %362
    %366 = vset.pattern.permute.xlu0 0
    %367 = vperm.xlu0 %366, %v44
    %v368 = vpop.permute.xlu0 %367
    %371 = vset.pattern.permute.xlu0 0
    %372 = vperm.xlu0 %371, %v45
    %v373 = vpop.permute.xlu0 %372
    %v375 = vmul.f32 %v311, %v338
    %v376 = vmul.f32 %v312, %v338
    %v377 = vmul.f32 %v313, %v338
    %v378 = vmul.f32 %v314, %v343
    %v379 = vmul.f32 %v315, %v343
    %v380 = vmul.f32 %v316, %v343
    %v381 = vmul.f32 %v317, %v348
    %v382 = vmul.f32 %v318, %v348
    %v383 = vmul.f32 %v319, %v348
    %v384 = vmul.f32 %v320, %v353
    %v385 = vmul.f32 %v321, %v353
    %v386 = vmul.f32 %v322, %v353
    %v387 = vmul.f32 %v323, %v358
    %v388 = vmul.f32 %v324, %v358
    %v389 = vmul.f32 %v325, %v358
    %v390 = vmul.f32 %v326, %v363
    %v391 = vmul.f32 %v327, %v363
    %v392 = vmul.f32 %v328, %v363
    %v393 = vmul.f32 %v329, %v368
    %v394 = vmul.f32 %v330, %v368
    %v395 = vmul.f32 %v331, %v368
    %v396 = vmul.f32 %v332, %v373
    %v397 = vmul.f32 %v333, %v373
    %v398 = vmul.f32 %v334, %v373
    %v399 = vadd.f32 %v375, %v378
    %v400 = vadd.f32 %v399, %v381
    %v401 = vadd.f32 %v400, %v384
    %v402 = vadd.f32 %v401, %v387
    %v403 = vadd.f32 %v402, %v390
    %v404 = vadd.f32 %v403, %v393
    %v405 = vadd.f32 %v404, %v396
    %v406 = vrot.slane %v405, 4
    %v407 = vadd.f32 %v405, %v406
    %v408 = vrot.slane %v407, 2
    %v409 = vadd.f32 %v407, %v408
    %v410 = vrot.slane %v409, 1
    %v411 = vadd.f32 %v409, %v410
    %v412 = vadd.f32 %v376, %v379
    %v413 = vadd.f32 %v412, %v382
    %v414 = vadd.f32 %v413, %v385
    %v415 = vadd.f32 %v414, %v388
    %v416 = vadd.f32 %v415, %v391
    %v417 = vadd.f32 %v416, %v394
    %v418 = vadd.f32 %v417, %v397
    %v419 = vrot.slane %v418, 4
    %v420 = vadd.f32 %v418, %v419
    %v421 = vrot.slane %v420, 2
    %v422 = vadd.f32 %v420, %v421
    %v423 = vrot.slane %v422, 1
    %v424 = vadd.f32 %v422, %v423
    %v425 = vadd.f32 %v377, %v380
    %v426 = vadd.f32 %v425, %v383
    %v427 = vadd.f32 %v426, %v386
    %v428 = vadd.f32 %v427, %v389
    %v429 = vadd.f32 %v428, %v392
    %v430 = vadd.f32 %v429, %v395
    %v431 = vadd.f32 %v430, %v398
    %v432 = vrot.slane %v431, 4
    %v433 = vadd.f32 %v431, %v432
    %v434 = vrot.slane %v433, 2
    %v435 = vadd.f32 %v433, %v434
    %v436 = vrot.slane %v435, 1
    %v437 = vadd.f32 %v435, %v436
    %v438 = vstv %s46
    %v439 = vadd.f32 %v411, %v438
    %v440 = vadd.f32 %v424, %v438
    %v441 = vadd.f32 %v437, %v438
    %v445 = vcombine.low %v439, %v440
    %v447 = vunpack.c.l.s4 1966171168
    %v448 = vunpack.c.0.s8 %v447
    %v449 = vlaneseq
    %v450 = vshrl.u32 %v449, 7
    %v451 = vsub.s32 %v448, %v450
    %v452 = vrot.slane %v445, %v451
    %v454 = vunpack.c.l.s4 1966171168
    %v455 = vunpack.c.0.s8 %v454
    %v456 = vlaneseq
    %v457 = vshrl.u32 %v456, 7
    %v458 = vsub.s32 %v455, %v457
    %v459 = vrot.slane %v441, %v458
    %v460 = vcombine.low %v452, %v459
    %v462 = vunpack.c.l.s4 1966171168
    %v463 = vunpack.c.0.s8 %v462
    %v464 = vlaneseq
    %v465 = vshrl.u32 %v464, 7
    %v466 = vsub.s32 %v463, %v465
    %v467 = vrot.slane %v460, %v466
    %v469 = vlaneseq
    %vm470 = vcmp.ge.s32.totalorder %v469, 0
    %vm471 = vcmp.lt.s32.totalorder %v469, 384
    %vm472 = vmand %vm470, %vm471
    %473 = vst.msk [vmem:[#allocation3] sm:$0x7] %vm472, %v467
    // Predicated region
    $region22: #{tpu_custom_call.1} parent=1 // pred_check
      _
    $region23: #{tpu_custom_call.1} parent=1 // pred_check_branch
      %475 = sbr.rel (0) target = $region25
    $region24: #{tpu_custom_call.1} parent=1 // pred_region
      %s477 = ssub.s32 48, 48
      %478 = vsyncadd [#allocation4], %s477
      %s480 = sshll.u32 [#allocation3], 4
      %s481 = int_to_ptr.vmem [resolvable:$true] %s480
      %483 = dma.vmem_to_hbm [thread:$0]  %s481, 48, %s5, [#allocation4]
    $region25: #{tpu_custom_call.1} parent=1 // pred_fallthru
      _
    // Predicated region
    $region26: #{tpu_custom_call.1} parent=1 // pred_check
      _
    $region27: #{tpu_custom_call.1} parent=1 // pred_check_branch
      %485 = sbr.rel (0) target = $region29
    $region28: #{tpu_custom_call.1} parent=1 // pred_region
      %486 = dma.done [#allocation4], 48
    $region29: #{tpu_custom_call.1} parent=1 // pred_fallthru
      _
    %487 = vsyncpa [#allocation4], 1

</llo_original>
